<compile_context>
chip_gen: v6e
topology: v6e:2x2x1
jax: 0.10.0
libtpu: 0.0.40
codegen_flags: <defaults>
</compile_context>

<pallas_src>
import jax
import jax.numpy as jnp
from jax.experimental import pallas as pl
from jax.experimental.pallas import tpu as pltpu


def _round_up(x: int, m: int) -> int:
    return (x + m - 1) // m * m


def _make_reinforce_kernel(obj_ignore_index: int, pair_ignore_index: int,
                           n_rows: int, tile_rows: int):
    def kernel(obj_logp_ref, obj_tgt_ref, pair_logp_ref, pair_tgt_ref, w_ref,
               out_ref,
               obj_nll_acc, obj_cnt_acc, pair_nll_acc, pair_cnt_acc):
        step = pl.program_id(0)
        row_start = step * tile_rows

        @pl.when(step == 0)
        def _init():
            obj_nll_acc[...] = jnp.zeros_like(obj_nll_acc)
            obj_cnt_acc[...] = jnp.zeros_like(obj_cnt_acc)
            pair_nll_acc[...] = jnp.zeros_like(pair_nll_acc)
            pair_cnt_acc[...] = jnp.zeros_like(pair_cnt_acc)

        def accumulate(logp_ref, tgt_ref, ignore_index, nll_acc, cnt_acc):
            logp = logp_ref[...].astype(jnp.float32)          # (tile, C), f32 accumulate
            tgt = tgt_ref[...]                                # (tile, 1) i32
            tile, c = logp.shape
            rows = row_start + jax.lax.broadcasted_iota(jnp.int32, (tile, 1), 0)
            in_bounds = rows < n_rows                         # mask ragged last tile
            valid = (tgt != ignore_index) & in_bounds         # (tile, 1)
            col = jax.lax.broadcasted_iota(jnp.int32, (tile, c), 1)
            hit = (col == tgt) & valid                        # one-hot(target) AND valid
            # Fused single pass: lane-wise partial sums; collapse to scalar only at finalize.
            nll_acc[...] += jnp.sum(jnp.where(hit, -logp, 0.0), axis=0, keepdims=True)
            cnt_acc[...] += jnp.sum(jnp.where(valid, 1.0, 0.0), axis=0, keepdims=True)

        accumulate(obj_logp_ref, obj_tgt_ref, obj_ignore_index, obj_nll_acc, obj_cnt_acc)
        accumulate(pair_logp_ref, pair_tgt_ref, pair_ignore_index, pair_nll_acc, pair_cnt_acc)

        @pl.when(step == pl.num_programs(0) - 1)
        def _finalize():
            # NOTE: if every target is ignore_index this is 0/0 -> NaN, matching the
            # PyTorch reduction='mean' behavior (intentionally not guarded).
            obj_mean = jnp.sum(obj_nll_acc[...]) / obj_cnt_acc[0, 0]
            pair_mean = jnp.sum(pair_nll_acc[...]) / pair_cnt_acc[0, 0]
            w = w_ref[0]                                      # mean(weight) == mean(reward)
            obj_res = obj_mean * w
            pair_res = pair_mean * w
            out_ref[0] = obj_res + pair_res                   # loss
            out_ref[1] = obj_res                              # obj_loss
            out_ref[2] = pair_res                             # pair_loss

    return kernel


def _get_reward(correct, norm_dist, reward_type):
    correct = jnp.asarray(correct, jnp.float32)
    norm_dist = jnp.asarray(norm_dist, jnp.float32)
    if reward_type == "acc":
        return correct + 1.0
    elif reward_type == "dist":
        return 2.0 - 1.0 * norm_dist
    elif reward_type == "acc_dist":
        return 2.0 + correct - 1.0 * norm_dist
    else:
        raise NotImplementedError


def reinforce_loss(
    obj_choice,
    pair_choice,
    obj_target,
    pair_target,
    metrics,
    obj_ignore_index: int = -100,
    pair_ignore_index: int = -100,
    reward_type: str = "acc_dist",
    tile_rows: int = 512,
):
    assert obj_choice.ndim == 3 and pair_choice.ndim == 3
    reward = _get_reward(metrics["correct"], metrics["norm_dist"], reward_type)  # (B,)

    B, L, c_obj = obj_choice.shape
    c_pair = pair_choice.shape[-1]
    N = B * L

    # mean(weight) over the flattened (B*L) rows == mean(reward): the per-row weight is a
    # uniform broadcast of reward over L, so we never materialize the (N,1) weight array.
    w_mean = jnp.mean(reward).reshape(1).astype(jnp.float32)

    # Keep native log-prob dtype over HBM (bf16 stays bf16); cast to f32 inside the kernel.
    obj_flat = obj_choice.reshape(N, c_obj)
    pair_flat = pair_choice.reshape(N, c_pair)
    obj_tgt = obj_target.reshape(N, 1).astype(jnp.int32)
    pair_tgt = pair_target.reshape(N, 1).astype(jnp.int32)

    tile = min(_round_up(tile_rows, 8), _round_up(N, 8))
    num_tiles = pl.cdiv(N, tile)

    kernel = _make_reinforce_kernel(obj_ignore_index, pair_ignore_index, N, tile)

    out = pl.pallas_call(
        kernel,
        out_shape=jax.ShapeDtypeStruct((3,), jnp.float32),
        grid=(num_tiles,),
        in_specs=[
            pl.BlockSpec((tile, c_obj), lambda i: (i, 0)),
            pl.BlockSpec((tile, 1), lambda i: (i, 0)),
            pl.BlockSpec((tile, c_pair), lambda i: (i, 0)),
            pl.BlockSpec((tile, 1), lambda i: (i, 0)),
            pl.BlockSpec(memory_space=pltpu.MemorySpace.SMEM),     # w_mean scalar
        ],
        out_specs=pl.BlockSpec(memory_space=pltpu.MemorySpace.SMEM),
        scratch_shapes=[
            pltpu.VMEM((1, c_obj), jnp.float32),   # lane-wise obj NLL partial sums
            pltpu.VMEM((1, 1), jnp.float32),       # obj valid count
            pltpu.VMEM((1, c_pair), jnp.float32),  # lane-wise pair NLL partial sums
            pltpu.VMEM((1, 1), jnp.float32),       # pair valid count
        ],
        compiler_params=pltpu.CompilerParams(
            dimension_semantics=("arbitrary",),
            vmem_limit_bytes=32 * 1024 * 1024,
        ),
    )(obj_flat, obj_tgt, pair_flat, pair_tgt, w_mean)

    return {
        "loss": out[0],
        "obj_loss": out[1],
        "pair_loss": out[2],
        "reward": reward,
    }


def _reference(obj_choice, pair_choice, obj_target, pair_target, metrics,
               obj_ignore=-100, pair_ignore=-100):
    """Pure-JAX reference matching the actual PyTorch behavior."""
    reward = _get_reward(metrics["correct"], metrics["norm_dist"], "acc_dist")
    B, L, _ = obj_choice.shape
    weight = jnp.broadcast_to(reward[:, None], (B, L)).reshape(-1)

    def nll_mean(logp3, tgt2, ign):
        logp = logp3.reshape(-1, logp3.shape[-1]).astype(jnp.float32)
        tgt = tgt2.reshape(-1)
        valid = tgt != ign
        safe = jnp.where(valid, tgt, 0)
        picked = jnp.take_along_axis(logp, safe[:, None], axis=1)[:, 0]
        return jnp.sum(jnp.where(valid, -picked, 0.0)) / jnp.sum(valid.astype(jnp.float32))

    obj_res = nll_mean(obj_choice, obj_target, obj_ignore) * jnp.mean(weight)
    pair_res = nll_mean(pair_choice, pair_target, pair_ignore) * jnp.mean(weight)
    return {"loss": obj_res + pair_res, "obj_loss": obj_res, "pair_loss": pair_res,
            "reward": reward}


if __name__ == "__main__":
    key = jax.random.PRNGKey(0)
    # N = B*L = 120 rows; tile_rows=32 below -> 4 grid steps with a ragged (masked) last tile,
    # exercising init / accumulate / finalize and the in-kernel bounds mask.
    B, L, C_OBJ, C_PAIR = 2, 60, 32, 16
    k1, k2, k3, k4, k5, k6 = jax.random.split(key, 6)

    obj_choice = jax.nn.log_softmax(jax.random.normal(k1, (B, L, C_OBJ), jnp.float32), axis=-1)
    pair_choice = jax.nn.log_softmax(jax.random.normal(k2, (B, L, C_PAIR), jnp.float32), axis=-1)
    obj_target = jax.random.randint(k3, (B, L), 0, C_OBJ, jnp.int32)
    pair_target = jax.random.randint(k4, (B, L), 0, C_PAIR, jnp.int32)
    # exercise ignore_index masking
    obj_target = obj_target.at[0, 0].set(-100)
    obj_target = obj_target.at[1, 17].set(-100)
    pair_target = pair_target.at[1, 3].set(-100)

    metrics = {
        "correct": jax.random.bernoulli(k5, 0.5, (B,)).astype(jnp.float32),
        "norm_dist": jax.random.uniform(k6, (B,), jnp.float32),
    }

    result = reinforce_loss(obj_choice, pair_choice, obj_target, pair_target, metrics,
                            tile_rows=32)
    result = jax.block_until_ready(result)

    ref = _reference(obj_choice, pair_choice, obj_target, pair_target, metrics)
    for k in ("loss", "obj_loss", "pair_loss", "reward"):
        assert jnp.allclose(result[k], ref[k], rtol=1e-4, atol=1e-5), (k, result[k], ref[k])

    print("KERNEL_OK")
</pallas_src>

<mosaic_0001>
module attributes {stable_mosaic.version = 11 : i64} {
  func.func @kernel(%arg0: i32, %arg1: memref<32x32xf32, #tpu.memory_space<vmem>>, %arg2: memref<32x1xi32, #tpu.memory_space<vmem>>, %arg3: memref<32x16xf32, #tpu.memory_space<vmem>>, %arg4: memref<32x1xi32, #tpu.memory_space<vmem>>, %arg5: memref<1xf32, #tpu.memory_space<smem>>, %arg6: memref<3xf32, #tpu.memory_space<smem>>, %arg7: memref<1x32xf32, #tpu.memory_space<vmem>>, %arg8: memref<1x1xf32, #tpu.memory_space<vmem>>, %arg9: memref<1x16xf32, #tpu.memory_space<vmem>>, %arg10: memref<1x1xf32, #tpu.memory_space<vmem>>) attributes {dimension_semantics = [#tpu.dimension_semantics<arbitrary>], iteration_bounds = array<i64: 4>, scalar_prefetch = 0 : i64, scratch_operands = 4 : i64, tpu.core_type = #tpu.core_type<tc>, window_params = [{transform_indices = @transform_0, window_bounds = array<i64: 32, 32>}, {transform_indices = @transform_1, window_bounds = array<i64: 32, 1>}, {transform_indices = @transform_2, window_bounds = array<i64: 32, 16>}, {transform_indices = @transform_3, window_bounds = array<i64: 32, 1>}, {transform_indices = @transform_4, window_bounds = array<i64: 1>}, {transform_indices = @transform_5, window_bounds = array<i64: 3>}]} {
    %c32_i32 = arith.constant 32 : i32
    %0 = arith.muli %arg0, %c32_i32 : i32
    %c0_i32 = arith.constant 0 : i32
    %1 = arith.cmpi eq, %arg0, %c0_i32 : i32
    %2 = arith.extui %1 : i1 to i32
    %c0_i32_0 = arith.constant 0 : i32
    %3 = arith.cmpi ne, %2, %c0_i32_0 : i32
    scf.if %3 {
      %cst_38 = arith.constant 0.000000e+00 : f32
      %71 = vector.broadcast %cst_38 : f32 to vector<1x32xf32>
      %c0_39 = arith.constant 0 : index
      %c0_40 = arith.constant 0 : index
      %72 = vector.load %arg7[%c0_39, %c0_40] : memref<1x32xf32, #tpu.memory_space<vmem>>, vector<1x32xf32>
      tpu.vector_store %arg7[%c0_39, %c0_40], %71 {strides = array<i32>} : memref<1x32xf32, #tpu.memory_space<vmem>>, vector<1x32xf32>,
      %cst_41 = arith.constant 0.000000e+00 : f32
      %73 = vector.broadcast %cst_41 : f32 to vector<1x1xf32>
      %c0_42 = arith.constant 0 : index
      %c0_43 = arith.constant 0 : index
      %74 = vector.load %arg8[%c0_42, %c0_43] : memref<1x1xf32, #tpu.memory_space<vmem>>, vector<1x1xf32>
      tpu.vector_store %arg8[%c0_42, %c0_43], %73 {strides = array<i32>} : memref<1x1xf32, #tpu.memory_space<vmem>>, vector<1x1xf32>,
      %cst_44 = arith.constant 0.000000e+00 : f32
      %75 = vector.broadcast %cst_44 : f32 to vector<1x16xf32>
      %c0_45 = arith.constant 0 : index
      %c0_46 = arith.constant 0 : index
      %76 = vector.load %arg9[%c0_45, %c0_46] : memref<1x16xf32, #tpu.memory_space<vmem>>, vector<1x16xf32>
      tpu.vector_store %arg9[%c0_45, %c0_46], %75 {strides = array<i32>} : memref<1x16xf32, #tpu.memory_space<vmem>>, vector<1x16xf32>,
      %cst_47 = arith.constant 0.000000e+00 : f32
      %77 = vector.broadcast %cst_47 : f32 to vector<1x1xf32>
      %c0_48 = arith.constant 0 : index
      %c0_49 = arith.constant 0 : index
      %78 = vector.load %arg10[%c0_48, %c0_49] : memref<1x1xf32, #tpu.memory_space<vmem>>, vector<1x1xf32>
      tpu.vector_store %arg10[%c0_48, %c0_49], %77 {strides = array<i32>} : memref<1x1xf32, #tpu.memory_space<vmem>>, vector<1x1xf32>,
    } else {
    }
    %c0 = arith.constant 0 : index
    %c0_1 = arith.constant 0 : index
    %4 = vector.load %arg1[%c0, %c0_1] : memref<32x32xf32, #tpu.memory_space<vmem>>, vector<32x32xf32>
    %c0_2 = arith.constant 0 : index
    %c0_3 = arith.constant 0 : index
    %5 = vector.load %arg2[%c0_2, %c0_3] : memref<32x1xi32, #tpu.memory_space<vmem>>, vector<32x1xi32>
    %6 = tpu.iota {dimensions = array<i32: 0>} : vector<32x1xi32>
    %7 = vector.broadcast %0 : i32 to vector<32x1xi32>
    %8 = arith.addi %7, %6 : vector<32x1xi32>
    %c120_i32 = arith.constant 120 : i32
    %9 = vector.broadcast %c120_i32 : i32 to vector<32x1xi32>
    %10 = arith.cmpi slt, %8, %9 : vector<32x1xi32>
    %c-100_i32 = arith.constant -100 : i32
    %11 = vector.broadcast %c-100_i32 : i32 to vector<32x1xi32>
    %12 = arith.cmpi ne, %5, %11 : vector<32x1xi32>
    %13 = arith.andi %12, %10 : vector<32x1xi1>
    %14 = tpu.iota {dimensions = array<i32: 1>} : vector<32x32xi32>
    %15 = vector.broadcast %5 : vector<32x1xi32> to vector<32x32xi32>
    %16 = arith.cmpi eq, %14, %15 : vector<32x32xi32>
    %17 = vector.broadcast %13 : vector<32x1xi1> to vector<32x32xi1>
    %18 = arith.andi %16, %17 : vector<32x32xi1>
    %c0_4 = arith.constant 0 : index
    %c0_5 = arith.constant 0 : index
    %19 = vector.load %arg7[%c0_4, %c0_5] : memref<1x32xf32, #tpu.memory_space<vmem>>, vector<1x32xf32>
    %cst = arith.constant 0.000000e+00 : f32
    %20 = vector.broadcast %cst : f32 to vector<32x32xf32>
    %21 = arith.subf %20, %4 : vector<32x32xf32>
    %cst_6 = arith.constant 0.000000e+00 : f32
    %22 = vector.broadcast %cst_6 : f32 to vector<32x32xf32>
    %23 = arith.select %18, %21, %22 : vector<32x32xi1>, vector<32x32xf32>
    %cst_7 = arith.constant dense<0.000000e+00> : vector<32xf32>
    %24 = vector.multi_reduction <add>, %23, %cst_7 [0] : vector<32x32xf32> to vector<32xf32>
    %25 = vector.shape_cast %24 : vector<32xf32> to vector<1x32xf32>
    %26 = arith.addf %19, %25 : vector<1x32xf32>
    %c0_8 = arith.constant 0 : index
    %c0_9 = arith.constant 0 : index
    %27 = vector.load %arg7[%c0_8, %c0_9] : memref<1x32xf32, #tpu.memory_space<vmem>>, vector<1x32xf32>
    tpu.vector_store %arg7[%c0_8, %c0_9], %26 {strides = array<i32>} : memref<1x32xf32, #tpu.memory_space<vmem>>, vector<1x32xf32>,
    %c0_10 = arith.constant 0 : index
    %c0_11 = arith.constant 0 : index
    %28 = vector.load %arg8[%c0_10, %c0_11] : memref<1x1xf32, #tpu.memory_space<vmem>>, vector<1x1xf32>
    %cst_12 = arith.constant 1.000000e+00 : f32
    %cst_13 = arith.constant 0.000000e+00 : f32
    %29 = vector.broadcast %cst_12 : f32 to vector<32x1xf32>
    %30 = vector.broadcast %cst_13 : f32 to vector<32x1xf32>
    %31 = arith.select %13, %29, %30 : vector<32x1xi1>, vector<32x1xf32>
    %cst_14 = arith.constant dense<0.000000e+00> : vector<1xf32>
    %32 = vector.multi_reduction <add>, %31, %cst_14 [0] : vector<32x1xf32> to vector<1xf32>
    %33 = vector.shape_cast %32 : vector<1xf32> to vector<1x1xf32>
    %34 = arith.addf %28, %33 : vector<1x1xf32>
    %c0_15 = arith.constant 0 : index
    %c0_16 = arith.constant 0 : index
    %35 = vector.load %arg8[%c0_15, %c0_16] : memref<1x1xf32, #tpu.memory_space<vmem>>, vector<1x1xf32>
    tpu.vector_store %arg8[%c0_15, %c0_16], %34 {strides = array<i32>} : memref<1x1xf32, #tpu.memory_space<vmem>>, vector<1x1xf32>,
    %c0_17 = arith.constant 0 : index
    %c0_18 = arith.constant 0 : index
    %36 = vector.load %arg3[%c0_17, %c0_18] : memref<32x16xf32, #tpu.memory_space<vmem>>, vector<32x16xf32>
    %c0_19 = arith.constant 0 : index
    %c0_20 = arith.constant 0 : index
    %37 = vector.load %arg4[%c0_19, %c0_20] : memref<32x1xi32, #tpu.memory_space<vmem>>, vector<32x1xi32>
    %38 = tpu.iota {dimensions = array<i32: 0>} : vector<32x1xi32>
    %39 = vector.broadcast %0 : i32 to vector<32x1xi32>
    %40 = arith.addi %39, %38 : vector<32x1xi32>
    %c120_i32_21 = arith.constant 120 : i32
    %41 = vector.broadcast %c120_i32_21 : i32 to vector<32x1xi32>
    %42 = arith.cmpi slt, %40, %41 : vector<32x1xi32>
    %c-100_i32_22 = arith.constant -100 : i32
    %43 = vector.broadcast %c-100_i32_22 : i32 to vector<32x1xi32>
    %44 = arith.cmpi ne, %37, %43 : vector<32x1xi32>
    %45 = arith.andi %44, %42 : vector<32x1xi1>
    %46 = tpu.iota {dimensions = array<i32: 1>} : vector<32x16xi32>
    %47 = vector.broadcast %37 : vector<32x1xi32> to vector<32x16xi32>
    %48 = arith.cmpi eq, %46, %47 : vector<32x16xi32>
    %49 = vector.broadcast %45 : vector<32x1xi1> to vector<32x16xi1>
    %50 = arith.andi %48, %49 : vector<32x16xi1>
    %c0_23 = arith.constant 0 : index
    %c0_24 = arith.constant 0 : index
    %51 = vector.load %arg9[%c0_23, %c0_24] : memref<1x16xf32, #tpu.memory_space<vmem>>, vector<1x16xf32>
    %cst_25 = arith.constant 0.000000e+00 : f32
    %52 = vector.broadcast %cst_25 : f32 to vector<32x16xf32>
    %53 = arith.subf %52, %36 : vector<32x16xf32>
    %cst_26 = arith.constant 0.000000e+00 : f32
    %54 = vector.broadcast %cst_26 : f32 to vector<32x16xf32>
    %55 = arith.select %50, %53, %54 : vector<32x16xi1>, vector<32x16xf32>
    %cst_27 = arith.constant dense<0.000000e+00> : vector<16xf32>
    %56 = vector.multi_reduction <add>, %55, %cst_27 [0] : vector<32x16xf32> to vector<16xf32>
    %57 = vector.shape_cast %56 : vector<16xf32> to vector<1x16xf32>
    %58 = arith.addf %51, %57 : vector<1x16xf32>
    %c0_28 = arith.constant 0 : index
    %c0_29 = arith.constant 0 : index
    %59 = vector.load %arg9[%c0_28, %c0_29] : memref<1x16xf32, #tpu.memory_space<vmem>>, vector<1x16xf32>
    tpu.vector_store %arg9[%c0_28, %c0_29], %58 {strides = array<i32>} : memref<1x16xf32, #tpu.memory_space<vmem>>, vector<1x16xf32>,
    %c0_30 = arith.constant 0 : index
    %c0_31 = arith.constant 0 : index
    %60 = vector.load %arg10[%c0_30, %c0_31] : memref<1x1xf32, #tpu.memory_space<vmem>>, vector<1x1xf32>
    %cst_32 = arith.constant 1.000000e+00 : f32
    %cst_33 = arith.constant 0.000000e+00 : f32
    %61 = vector.broadcast %cst_32 : f32 to vector<32x1xf32>
    %62 = vector.broadcast %cst_33 : f32 to vector<32x1xf32>
    %63 = arith.select %45, %61, %62 : vector<32x1xi1>, vector<32x1xf32>
    %cst_34 = arith.constant dense<0.000000e+00> : vector<1xf32>
    %64 = vector.multi_reduction <add>, %63, %cst_34 [0] : vector<32x1xf32> to vector<1xf32>
    %65 = vector.shape_cast %64 : vector<1xf32> to vector<1x1xf32>
    %66 = arith.addf %60, %65 : vector<1x1xf32>
    %c0_35 = arith.constant 0 : index
    %c0_36 = arith.constant 0 : index
    %67 = vector.load %arg10[%c0_35, %c0_36] : memref<1x1xf32, #tpu.memory_space<vmem>>, vector<1x1xf32>
    tpu.vector_store %arg10[%c0_35, %c0_36], %66 {strides = array<i32>} : memref<1x1xf32, #tpu.memory_space<vmem>>, vector<1x1xf32>,
    %c3_i32 = arith.constant 3 : i32
    %68 = arith.cmpi eq, %arg0, %c3_i32 : i32
    %69 = arith.extui %68 : i1 to i32
    %c0_i32_37 = arith.constant 0 : i32
    %70 = arith.cmpi ne, %69, %c0_i32_37 : i32
    scf.if %70 {
      %c0_38 = arith.constant 0 : index
      %c0_39 = arith.constant 0 : index
      %71 = vector.load %arg7[%c0_38, %c0_39] : memref<1x32xf32, #tpu.memory_space<vmem>>, vector<1x32xf32>
      %72 = vector.shape_cast %71 : vector<1x32xf32> to vector<1x1x32xf32>
      %cst_40 = arith.constant dense<0.000000e+00> : vector<1xf32>
      %73 = vector.multi_reduction <add>, %72, %cst_40 [1, 2] : vector<1x1x32xf32> to vector<1xf32>
      %74 = vector.shape_cast %73 : vector<1xf32> to vector<1x1x1xf32>
      %75 = vector.extract %74[0, 0, 0] : f32 from vector<1x1x1xf32>
      %c0_41 = arith.constant 0 : index
      %c0_42 = arith.constant 0 : index
      %76 = vector.load %arg8[%c0_41, %c0_42] : memref<1x1xf32, #tpu.memory_space<vmem>>, vector<1x1xf32>
      %77 = vector.extract %76[0, 0] : f32 from vector<1x1xf32>
      %78 = arith.divf %75, %77 : f32
      %c0_43 = arith.constant 0 : index
      %c0_44 = arith.constant 0 : index
      %79 = vector.load %arg9[%c0_43, %c0_44] : memref<1x16xf32, #tpu.memory_space<vmem>>, vector<1x16xf32>
      %80 = vector.shape_cast %79 : vector<1x16xf32> to vector<1x1x16xf32>
      %cst_45 = arith.constant dense<0.000000e+00> : vector<1xf32>
      %81 = vector.multi_reduction <add>, %80, %cst_45 [1, 2] : vector<1x1x16xf32> to vector<1xf32>
      %82 = vector.shape_cast %81 : vector<1xf32> to vector<1x1x1xf32>
      %83 = vector.extract %82[0, 0, 0] : f32 from vector<1x1x1xf32>
      %c0_46 = arith.constant 0 : index
      %c0_47 = arith.constant 0 : index
      %84 = vector.load %arg10[%c0_46, %c0_47] : memref<1x1xf32, #tpu.memory_space<vmem>>, vector<1x1xf32>
      %85 = vector.extract %84[0, 0] : f32 from vector<1x1xf32>
      %86 = arith.divf %83, %85 : f32
      %c0_48 = arith.constant 0 : index
      %87 = memref.load %arg5[%c0_48] : memref<1xf32, #tpu.memory_space<smem>>
      %88 = arith.mulf %78, %87 : f32
      %89 = arith.mulf %86, %87 : f32
      %90 = arith.addf %88, %89 : f32
      %c0_49 = arith.constant 0 : index
      %91 = memref.load %arg6[%c0_49] : memref<3xf32, #tpu.memory_space<smem>>
      memref.store %90, %arg6[%c0_49] : memref<3xf32, #tpu.memory_space<smem>>
      %c1 = arith.constant 1 : index
      %92 = memref.load %arg6[%c1] : memref<3xf32, #tpu.memory_space<smem>>
      memref.store %88, %arg6[%c1] : memref<3xf32, #tpu.memory_space<smem>>
      %c2 = arith.constant 2 : index
      %93 = memref.load %arg6[%c2] : memref<3xf32, #tpu.memory_space<smem>>
      memref.store %89, %arg6[%c2] : memref<3xf32, #tpu.memory_space<smem>>
    } else {
    }
    return
  }
  func.func @transform_0(%arg0: i32) -> (i32, i32) {
    %c0_i32 = arith.constant 0 : i32
    %c0_i32_0 = arith.constant 0 : i32
    return %arg0, %c0_i32 : i32, i32
  }
  func.func @transform_1(%arg0: i32) -> (i32, i32) {
    %c0_i32 = arith.constant 0 : i32
    %c0_i32_0 = arith.constant 0 : i32
    return %arg0, %c0_i32 : i32, i32
  }
  func.func @transform_2(%arg0: i32) -> (i32, i32) {
    %c0_i32 = arith.constant 0 : i32
    %c0_i32_0 = arith.constant 0 : i32
    return %arg0, %c0_i32 : i32, i32
  }
  func.func @transform_3(%arg0: i32) -> (i32, i32) {
    %c0_i32 = arith.constant 0 : i32
    %c0_i32_0 = arith.constant 0 : i32
    return %arg0, %c0_i32 : i32, i32
  }
  func.func @transform_4(%arg0: i32) -> i32 {
    %c0_i32 = arith.constant 0 : i32
    %c0_i32_0 = arith.constant 0 : i32
    return %c0_i32 : i32
  }
  func.func @transform_5(%arg0: i32) -> i32 {
    %c0_i32 = arith.constant 0 : i32
    %c0_i32_0 = arith.constant 0 : i32
    return %c0_i32 : i32
  }
}

</mosaic_0001>

<llo_original>
// kernel: tpu_custom_call.1
$region0: #{tpu_custom_call.1}
  #allocation0 [shape = 'u32[]', space=smem, size = 0x4, offset = 0x4, fixed_abs, tag = 'smem constant byte address 0x4 - core index']
  #allocation1 [shape = 'u32[144,128]{1,0:T(1,128)}', space=vmem, size = 0x12000, scoped, tag = 'internal scratch']
  #allocation2 [shape = 'f32[1,32]{1,0:T(1,128)}', space=vmem, size = 0x200, scoped, tag = 'scratch operand']
  #allocation3 [shape = 'f32[1,1]{1,0:T(1,128)}', space=vmem, size = 0x200, scoped, tag = 'scratch operand']
  #allocation4 [shape = 'f32[1,16]{1,0:T(1,128)}', space=vmem, size = 0x200, scoped, tag = 'scratch operand']
  #allocation5 [shape = 'f32[1,1]{1,0:T(1,128)}', space=vmem, size = 0x200, scoped, tag = 'scratch operand']
  #allocation6 [shape = 'f32[1]{0:T(128)S(6)}', space=smem, size = 0x200, scoped, tag = 'scoped memory for tpu_custom_call.1']
  %s0 = inlined_call_operand.vmem [shape: f32[120,32], index: 0, kind: input, shape index: {}]
  %s1 = inlined_call_operand.vmem [shape: s32[120,1], index: 1, kind: input, shape index: {}]
  %s2 = inlined_call_operand.vmem [shape: f32[120,16], index: 2, kind: input, shape index: {}]
  %s3 = inlined_call_operand.vmem [shape: s32[120,1], index: 3, kind: input, shape index: {}]
  %s4 = inlined_call_operand.<no memory space> [shape: f32[1], index: 4, kind: input, shape index: {}]
  %s5 = inlined_call_operand.hbm [shape: f32[3], index: 5, kind: output, shape index: {}]
  %s6 = sld [smem:[#allocation0]]
  $region61: #{tpu_custom_call.1} parent=0
    _
  %s8 = ssub.s32 1, %s6
  %s9 = scalar_select 0, %s8, %s6
  %10 = sst [smem:[#allocation6]] %s4
  $region1: #{tpu_custom_call.1} parent=0
    #allocation7 [shape = 'u8[512]{0}', space=smem, size = 0x200, scoped, tag = 'output window, operand 0, single buffered']
    #allocation8 [shape = 's32[2]{0}', space=sflag, size = 0x8, scoped, tag = 'scoped memory for tpu_custom_call.1']
    %11 = vsyncpa [#allocation8], 0
    loop: start=0, step=1, limit=6
    $region2: #{tpu_custom_call.1} parent=1 // loop_pre_header
      _
    $region3: #{tpu_custom_call.1} parent=1 // loop_header
      %s13 = sphi 0, %s17
      %p14 = scmp.ge.s32.totalorder %s13, 6
      %s23 = sphi 0, %s25
      %s26 = sphi 0, %s23
      %s27 = sphi 0, %s26
      %s43 = sphi 0, %s27
      %s49 = sphi 0, %s51
      %s52 = sphi 0, %s49
      %s53 = sphi 0, %s52
      %s69 = sphi 0, %s53
      %s75 = sphi 0, %s77
      %s78 = sphi 0, %s75
      %s79 = sphi 0, %s78
      %s95 = sphi 0, %s79
      %s101 = sphi 0, %s103
      %s104 = sphi 0, %s101
      %s105 = sphi 0, %s104
      %s121 = sphi 0, %s105
      %s125 = sphi 0, %s125
      %s127 = sphi 0, %s125
      %s128 = sphi 0, %s127
      %s142 = sphi 0, %s128
      %s146 = sphi 0, %s146
      %s148 = sphi 0, %s146
      %s149 = sphi 0, %s148
      %s163 = sphi 0, %s149
    $region4: #{tpu_custom_call.1} parent=1 // loop_header_branch
      %16 = sbr.rel (%p14) target = $region8
    $region5: #{tpu_custom_call.1} parent=1 // loop_body
      %s18 = ssub.s32 %s13, 1
      %s19 = ssub.s32 %s13, 2
      %s20 = sadd.s32 %s13, 1
      %s21 = ssub.s32 %s13, %s20
      %p22 = scmp.eq.s32.totalorder %s21, 0
      %s24 = sadd.s32 %s23, 1
      %s25 = scalar_select %p22, %s23, %s24
      %p28 = pneg %p22
      %p29 = scmp.eq.s32.totalorder %s13, 3
      %p30 = por %p28, %p29
      %p31 = scmp.ne.s32.totalorder %s23, %s26
      %p32 = scmp.eq.s32.totalorder %s13, 0
      %p33 = por %p31, %p32
      %p34 = scmp.ne.s32.totalorder %s23, %s26
      %p35 = scmp.eq.s32.totalorder %s18, 3
      %p36 = por %p34, %p35
      %p37 = scmp.ne.s32.totalorder %s26, %s27
      %p38 = scmp.eq.s32.totalorder %s18, 0
      %p39 = por %p37, %p38
      %p40 = scmp.ne.s32.totalorder %s26, %s27
      %p41 = scmp.eq.s32.totalorder %s19, 3
      %p42 = por %p40, %p41
      %p44 = scmp.ne.s32.totalorder %s27, %s43
      %p45 = scmp.eq.s32.totalorder %s19, 0
      %p46 = por %p44, %p45
      %s47 = ssub.s32 %s13, %s20
      %p48 = scmp.eq.s32.totalorder %s47, 0
      %s50 = sadd.s32 %s49, 1
      %s51 = scalar_select %p48, %s49, %s50
      %p54 = pneg %p48
      %p55 = scmp.eq.s32.totalorder %s13, 3
      %p56 = por %p54, %p55
      %p57 = scmp.ne.s32.totalorder %s49, %s52
      %p58 = scmp.eq.s32.totalorder %s13, 0
      %p59 = por %p57, %p58
      %p60 = scmp.ne.s32.totalorder %s49, %s52
      %p61 = scmp.eq.s32.totalorder %s18, 3
      %p62 = por %p60, %p61
      %p63 = scmp.ne.s32.totalorder %s52, %s53
      %p64 = scmp.eq.s32.totalorder %s18, 0
      %p65 = por %p63, %p64
      %p66 = scmp.ne.s32.totalorder %s52, %s53
      %p67 = scmp.eq.s32.totalorder %s19, 3
      %p68 = por %p66, %p67
      %p70 = scmp.ne.s32.totalorder %s53, %s69
      %p71 = scmp.eq.s32.totalorder %s19, 0
      %p72 = por %p70, %p71
      %s73 = ssub.s32 %s13, %s20
      %p74 = scmp.eq.s32.totalorder %s73, 0
      %s76 = sadd.s32 %s75, 1
      %s77 = scalar_select %p74, %s75, %s76
      %p80 = pneg %p74
      %p81 = scmp.eq.s32.totalorder %s13, 3
      %p82 = por %p80, %p81
      %p83 = scmp.ne.s32.totalorder %s75, %s78
      %p84 = scmp.eq.s32.totalorder %s13, 0
      %p85 = por %p83, %p84
      %p86 = scmp.ne.s32.totalorder %s75, %s78
      %p87 = scmp.eq.s32.totalorder %s18, 3
      %p88 = por %p86, %p87
      %p89 = scmp.ne.s32.totalorder %s78, %s79
      %p90 = scmp.eq.s32.totalorder %s18, 0
      %p91 = por %p89, %p90
      %p92 = scmp.ne.s32.totalorder %s78, %s79
      %p93 = scmp.eq.s32.totalorder %s19, 3
      %p94 = por %p92, %p93
      %p96 = scmp.ne.s32.totalorder %s79, %s95
      %p97 = scmp.eq.s32.totalorder %s19, 0
      %p98 = por %p96, %p97
      %s99 = ssub.s32 %s13, %s20
      %p100 = scmp.eq.s32.totalorder %s99, 0
      %s102 = sadd.s32 %s101, 1
      %s103 = scalar_select %p100, %s101, %s102
      %p106 = pneg %p100
      %p107 = scmp.eq.s32.totalorder %s13, 3
      %p108 = por %p106, %p107
      %p109 = scmp.ne.s32.totalorder %s101, %s104
      %p110 = scmp.eq.s32.totalorder %s13, 0
      %p111 = por %p109, %p110
      %p112 = scmp.ne.s32.totalorder %s101, %s104
      %p113 = scmp.eq.s32.totalorder %s18, 3
      %p114 = por %p112, %p113
      %p115 = scmp.ne.s32.totalorder %s104, %s105
      %p116 = scmp.eq.s32.totalorder %s18, 0
      %p117 = por %p115, %p116
      %p118 = scmp.ne.s32.totalorder %s104, %s105
      %p119 = scmp.eq.s32.totalorder %s19, 3
      %p120 = por %p118, %p119
      %p122 = scmp.ne.s32.totalorder %s105, %s121
      %p123 = scmp.eq.s32.totalorder %s19, 0
      %p124 = por %p122, %p123
      %s126 = sadd.s32 %s125, 1
      %p129 = scmp.eq.s32.totalorder %s13, 3
      %p130 = scmp.ne.s32.totalorder %s125, %s127
      %p131 = scmp.eq.s32.totalorder %s13, 0
      %p132 = por %p130, %p131
      %p133 = scmp.ne.s32.totalorder %s125, %s127
      %p134 = scmp.eq.s32.totalorder %s18, 3
      %p135 = por %p133, %p134
      %p136 = scmp.ne.s32.totalorder %s127, %s128
      %p137 = scmp.eq.s32.totalorder %s18, 0
      %p138 = por %p136, %p137
      %p139 = scmp.ne.s32.totalorder %s127, %s128
      %p140 = scmp.eq.s32.totalorder %s19, 3
      %p141 = por %p139, %p140
      %p143 = scmp.ne.s32.totalorder %s128, %s142
      %p144 = scmp.eq.s32.totalorder %s19, 0
      %p145 = por %p143, %p144
      %s147 = sadd.s32 %s146, 1
      %p150 = scmp.eq.s32.totalorder %s13, 3
      %p151 = scmp.ne.s32.totalorder %s146, %s148
      %p152 = scmp.eq.s32.totalorder %s13, 0
      %p153 = por %p151, %p152
      %p154 = scmp.ne.s32.totalorder %s146, %s148
      %p155 = scmp.eq.s32.totalorder %s18, 3
      %p156 = por %p154, %p155
      %p157 = scmp.ne.s32.totalorder %s148, %s149
      %p158 = scmp.eq.s32.totalorder %s18, 0
      %p159 = por %p157, %p158
      %p160 = scmp.ne.s32.totalorder %s148, %s149
      %p161 = scmp.eq.s32.totalorder %s19, 3
      %p162 = por %p160, %p161
      %p164 = scmp.ne.s32.totalorder %s149, %s163
      %p165 = scmp.eq.s32.totalorder %s19, 0
      %p166 = por %p164, %p165
      %p167 = scmp.le.s32.totalorder 1, %s13
      %p168 = scmp.lt.s32.totalorder %s13, 5
      %p169 = pnand %p167, %p168
      %p170 = pneg %p169
      // Predicated region
      $region9: #{tpu_custom_call.1} parent=5 // pred_check
        _
      $region10: #{tpu_custom_call.1} parent=5 // pred_check_branch
        %172 = sbr.rel (%p169) target = $region12
      $region11: #{tpu_custom_call.1} parent=5 // pred_region
        %s173 = ssub.s32 %s13, 1
        // Predicated region
        $region13: #{tpu_custom_call.1} parent=11 // pred_check
          %p174 = pneg %p138
        $region14: #{tpu_custom_call.1} parent=11 // pred_check_branch
          %176 = sbr.rel (%p174) target = $region16
        $region15: #{tpu_custom_call.1} parent=11 // pred_region
          _
        $region16: #{tpu_custom_call.1} parent=11 // pred_fallthru
          _
      $region12: #{tpu_custom_call.1} parent=5 // pred_fallthru
        _
      %p177 = scmp.lt.s32.totalorder %s13, 4
      // Predicated region
      $region17: #{tpu_custom_call.1} parent=5 // pred_check
        %p178 = pneg %p177
      $region18: #{tpu_custom_call.1} parent=5 // pred_check_branch
        %180 = sbr.rel (%p178) target = $region20
      $region19: #{tpu_custom_call.1} parent=5 // pred_region
        // Predicated region
        $region21: #{tpu_custom_call.1} parent=19 // pred_check
          %p181 = pneg %p33
        $region22: #{tpu_custom_call.1} parent=19 // pred_check_branch
          %183 = sbr.rel (%p181) target = $region24
        $region23: #{tpu_custom_call.1} parent=19 // pred_region
          %s184 = smul.u32 4, %s13
          %s185 = ssub.s32 15, %s184
          %p186 = scmp.lt.s32.totalorder %s185, 4
          %s187 = scalar_select %p186, %s185, 4
          %s188 = smul.u32 128, %s187
          %p189 = scmp.lt.s32.totalorder %s184, 14
          %s190 = scalar_select %p189, %s184, 14
          %s191 = smul.addr %s190, 8
          %s192 = scalar_lea.vmem %s0, %s191
          %s193 = smul.u32 4, %s13
          %s194 = ssub.s32 15, %s193
          %p195 = scmp.lt.s32.totalorder %s194, 4
          %s196 = scalar_select %p195, %s194, 4
          %s197 = smul.u32 128, %s196
        $region24: #{tpu_custom_call.1} parent=19 // pred_fallthru
          _
        // Predicated region
        $region25: #{tpu_custom_call.1} parent=19 // pred_check
          %p198 = pneg %p59
        $region26: #{tpu_custom_call.1} parent=19 // pred_check_branch
          %200 = sbr.rel (%p198) target = $region28
        $region27: #{tpu_custom_call.1} parent=19 // pred_region
          %s201 = smul.u32 4, %s13
          %s202 = ssub.s32 15, %s201
          %p203 = scmp.lt.s32.totalorder %s202, 4
          %s204 = scalar_select %p203, %s202, 4
          %s205 = smul.u32 128, %s204
          %p206 = scmp.lt.s32.totalorder %s201, 14
          %s207 = scalar_select %p206, %s201, 14
          %s208 = smul.addr %s207, 8
          %s209 = scalar_lea.vmem %s1, %s208
          %s210 = smul.u32 4, %s13
          %s211 = ssub.s32 15, %s210
          %p212 = scmp.lt.s32.totalorder %s211, 4
          %s213 = scalar_select %p212, %s211, 4
          %s214 = smul.u32 128, %s213
        $region28: #{tpu_custom_call.1} parent=19 // pred_fallthru
          _
        // Predicated region
        $region29: #{tpu_custom_call.1} parent=19 // pred_check
          %p215 = pneg %p85
        $region30: #{tpu_custom_call.1} parent=19 // pred_check_branch
          %217 = sbr.rel (%p215) target = $region32
        $region31: #{tpu_custom_call.1} parent=19 // pred_region
          %s218 = smul.u32 4, %s13
          %s219 = ssub.s32 15, %s218
          %p220 = scmp.lt.s32.totalorder %s219, 4
          %s221 = scalar_select %p220, %s219, 4
          %s222 = smul.u32 128, %s221
          %p223 = scmp.lt.s32.totalorder %s218, 14
          %s224 = scalar_select %p223, %s218, 14
          %s225 = smul.addr %s224, 8
          %s226 = scalar_lea.vmem %s2, %s225
          %s227 = smul.u32 4, %s13
          %s228 = ssub.s32 15, %s227
          %p229 = scmp.lt.s32.totalorder %s228, 4
          %s230 = scalar_select %p229, %s228, 4
          %s231 = smul.u32 128, %s230
        $region32: #{tpu_custom_call.1} parent=19 // pred_fallthru
          _
        // Predicated region
        $region33: #{tpu_custom_call.1} parent=19 // pred_check
          %p232 = pneg %p111
        $region34: #{tpu_custom_call.1} parent=19 // pred_check_branch
          %234 = sbr.rel (%p232) target = $region36
        $region35: #{tpu_custom_call.1} parent=19 // pred_region
          %s235 = smul.u32 4, %s13
          %s236 = ssub.s32 15, %s235
          %p237 = scmp.lt.s32.totalorder %s236, 4
          %s238 = scalar_select %p237, %s236, 4
          %s239 = smul.u32 128, %s238
          %p240 = scmp.lt.s32.totalorder %s235, 14
          %s241 = scalar_select %p240, %s235, 14
          %s242 = smul.addr %s241, 8
          %s243 = scalar_lea.vmem %s3, %s242
          %s244 = smul.u32 4, %s13
          %s245 = ssub.s32 15, %s244
          %p246 = scmp.lt.s32.totalorder %s245, 4
          %s247 = scalar_select %p246, %s245, 4
          %s248 = smul.u32 128, %s247
        $region36: #{tpu_custom_call.1} parent=19 // pred_fallthru
          _
      $region20: #{tpu_custom_call.1} parent=5 // pred_fallthru
        _
      %p249 = scmp.le.s32.totalorder 1, %s13
      %p250 = scmp.lt.s32.totalorder %s13, 5
      %p251 = pnand %p249, %p250
      %p252 = pneg %p251
      // Predicated region
      $region37: #{tpu_custom_call.1} parent=5 // pred_check
        _
      $region38: #{tpu_custom_call.1} parent=5 // pred_check_branch
        %254 = sbr.rel (%p251) target = $region40
      $region39: #{tpu_custom_call.1} parent=5 // pred_region
        %s255 = ssub.s32 %s13, 1
        %s256 = smul.u32 4, %s18
        %s257 = ssub.s32 15, %s256
        %p258 = scmp.lt.s32.totalorder %s257, 4
        %s259 = scalar_select %p258, %s257, 4
        %s260 = smul.u32 128, %s259
        %p261 = scmp.lt.s32.totalorder %s256, 14
        %s262 = scalar_select %p261, %s256, 14
        %s263 = smul.addr %s262, 8
        %s264 = scalar_lea.vmem %s0, %s263
        %p265 = pneg %p39
        %p266 = pneg %p36
        %s267 = smul.u32 4, %s18
        %s268 = ssub.s32 15, %s267
        %p269 = scmp.lt.s32.totalorder %s268, 4
        %s270 = scalar_select %p269, %s268, 4
        %s271 = smul.u32 128, %s270
        %p272 = scmp.lt.s32.totalorder %s267, 14
        %s273 = scalar_select %p272, %s267, 14
        %s274 = smul.addr %s273, 8
        %s275 = scalar_lea.vmem %s1, %s274
        %p276 = pneg %p65
        %p277 = pneg %p62
        %s278 = smul.u32 4, %s18
        %s279 = ssub.s32 15, %s278
        %p280 = scmp.lt.s32.totalorder %s279, 4
        %s281 = scalar_select %p280, %s279, 4
        %s282 = smul.u32 128, %s281
        %p283 = scmp.lt.s32.totalorder %s278, 14
        %s284 = scalar_select %p283, %s278, 14
        %s285 = smul.addr %s284, 8
        %s286 = scalar_lea.vmem %s2, %s285
        %p287 = pneg %p91
        %p288 = pneg %p88
        %s289 = smul.u32 4, %s18
        %s290 = ssub.s32 15, %s289
        %p291 = scmp.lt.s32.totalorder %s290, 4
        %s292 = scalar_select %p291, %s290, 4
        %s293 = smul.u32 128, %s292
        %p294 = scmp.lt.s32.totalorder %s289, 14
        %s295 = scalar_select %p294, %s289, 14
        %s296 = smul.addr %s295, 8
        %s297 = scalar_lea.vmem %s3, %s296
        %p298 = pneg %p117
        %p299 = pneg %p114
        %p300 = pneg %p138
        %p301 = pneg %p135
        %p302 = pneg %p159
        %p303 = pneg %p156
        %s304 = smul.u32 4, %s18
        %s305 = ssub.s32 15, %s304
        %p306 = scmp.lt.s32.totalorder %s305, 4
        %s307 = scalar_select %p306, %s305, 4
        %s308 = smul.u32 128, %s307
        %p309 = scmp.lt.s32.totalorder %s304, 14
        %s310 = scalar_select %p309, %s304, 14
        %s311 = smul.addr %s310, 8
        %s312 = scalar_lea.vmem %s0, %s311
        %s313 = smul.u32 4, %s18
        %s314 = ssub.s32 15, %s313
        %p315 = scmp.lt.s32.totalorder %s314, 4
        %s316 = scalar_select %p315, %s314, 4
        %s317 = smul.u32 128, %s316
        %s318 = smul.u32 4, %s18
        %s319 = ssub.s32 15, %s318
        %p320 = scmp.lt.s32.totalorder %s319, 4
        %s321 = scalar_select %p320, %s319, 4
        %s322 = smul.u32 128, %s321
        %p323 = scmp.lt.s32.totalorder %s318, 14
        %s324 = scalar_select %p323, %s318, 14
        %s325 = smul.addr %s324, 8
        %s326 = scalar_lea.vmem %s1, %s325
        %s327 = smul.u32 4, %s18
        %s328 = ssub.s32 15, %s327
        %p329 = scmp.lt.s32.totalorder %s328, 4
        %s330 = scalar_select %p329, %s328, 4
        %s331 = smul.u32 128, %s330
        %s332 = smul.u32 4, %s18
        %s333 = ssub.s32 15, %s332
        %p334 = scmp.lt.s32.totalorder %s333, 4
        %s335 = scalar_select %p334, %s333, 4
        %s336 = smul.u32 128, %s335
        %p337 = scmp.lt.s32.totalorder %s332, 14
        %s338 = scalar_select %p337, %s332, 14
        %s339 = smul.addr %s338, 8
        %s340 = scalar_lea.vmem %s2, %s339
        %s341 = smul.u32 4, %s18
        %s342 = ssub.s32 15, %s341
        %p343 = scmp.lt.s32.totalorder %s342, 4
        %s344 = scalar_select %p343, %s342, 4
        %s345 = smul.u32 128, %s344
        %s346 = smul.u32 4, %s18
        %s347 = ssub.s32 15, %s346
        %p348 = scmp.lt.s32.totalorder %s347, 4
        %s349 = scalar_select %p348, %s347, 4
        %s350 = smul.u32 128, %s349
        %p351 = scmp.lt.s32.totalorder %s346, 14
        %s352 = scalar_select %p351, %s346, 14
        %s353 = smul.addr %s352, 8
        %s354 = scalar_lea.vmem %s3, %s353
        %s355 = smul.u32 4, %s18
        %s356 = ssub.s32 15, %s355
        %p357 = scmp.lt.s32.totalorder %s356, 4
        %s358 = scalar_select %p357, %s356, 4
        %s359 = smul.u32 128, %s358
        %s360 = smul.u32 %s18, 32
        %p361 = scmp.eq.s32.totalorder %s18, 0
        // Predicated region
        $region41: #{tpu_custom_call.1} parent=39 // pred_check
          %p362 = pneg %p361
        $region42: #{tpu_custom_call.1} parent=39 // pred_check_branch
          %364 = sbr.rel (%p362) target = $region44
        $region43: #{tpu_custom_call.1} parent=39 // pred_region
          %vm365 = vcmask 253952
          %366 = vst.msk [vmem:[#allocation2] sm:$0x1] %vm365, 0.0
          %vm367 = vcmask 0
          %368 = vst.msk [vmem:[#allocation3] sm:$0x1] %vm367, 0.0
          %vm369 = vcmask 122880
          %370 = vst.msk [vmem:[#allocation4] sm:$0x1] %vm369, 0.0
          %371 = vst.msk [vmem:[#allocation5] sm:$0x1] %vm367, 0.0
        $region44: #{tpu_custom_call.1} parent=39 // pred_fallthru
          _
        %v372 = vld [vmem:[%s312] sm:$0xff]
        %v373 = vld [vmem:[%s312 + $0x8] sm:$0xff]
        %v374 = vld [vmem:[%s312 + $0x10] sm:$0xff]
        %v375 = vld [vmem:[%s312 + $0x18] sm:$0xff]
        %v376 = vld [vmem:[%s326] sm:$0xff]
        %v377 = vld [vmem:[%s326 + $0x8] sm:$0xff]
        %v378 = vld [vmem:[%s326 + $0x10] sm:$0xff]
        %v379 = vld [vmem:[%s326 + $0x18] sm:$0xff]
        %v380 = vlaneseq
        %v381 = vshrl.u32 %v380, 7
        %v382 = vadd.s32 %v381, 8
        %v383 = vadd.s32 %v381, 16
        %v384 = vadd.s32 %v381, 24
        %v385 = vstv %s360
        %v386 = vadd.s32 %v385, %v381
        %v387 = vadd.s32 %v385, %v382
        %v388 = vadd.s32 %v385, %v383
        %v389 = vadd.s32 %v385, %v384
        %vm390 = vcmp.lt.s32.totalorder %v386, 120
        %vm391 = vcmp.lt.s32.totalorder %v387, 120
        %vm392 = vcmp.lt.s32.totalorder %v388, 120
        %vm393 = vcmp.lt.s32.totalorder %v389, 120
        %vm394 = vcmp.ne.s32.totalorder %v376, 4294967196
        %vm395 = vcmp.ne.s32.totalorder %v377, 4294967196
        %vm396 = vcmp.ne.s32.totalorder %v378, 4294967196
        %vm397 = vcmp.ne.s32.totalorder %v379, 4294967196
        %vm398 = vmand %vm394, %vm390
        %vm399 = vmand %vm395, %vm391
        %vm400 = vmand %vm396, %vm392
        %vm401 = vmand %vm397, %vm393
        %v402 = vlaneseq
        %v403 = vand.u32 %v402, 127
        %404 = vset.pattern.permute.xlu0 0
        %405 = vperm.xlu0 %404, %v376
        %v406 = vpop.permute.xlu0 %405
        %407 = vset.pattern.permute.xlu0 0
        %408 = vperm.xlu0 %407, %v377
        %v409 = vpop.permute.xlu0 %408
        %410 = vset.pattern.permute.xlu0 0
        %411 = vperm.xlu0 %410, %v378
        %v412 = vpop.permute.xlu0 %411
        %413 = vset.pattern.permute.xlu0 0
        %414 = vperm.xlu0 %413, %v379
        %v415 = vpop.permute.xlu0 %414
        %vm416 = vcmp.eq.s32.totalorder %v403, %v406
        %vm417 = vcmp.eq.s32.totalorder %v403, %v409
        %vm418 = vcmp.eq.s32.totalorder %v403, %v412
        %vm419 = vcmp.eq.s32.totalorder %v403, %v415
        %v420 = vsel %vm398, 1, 0
        %v421 = vsel %vm399, 1, 0
        %v422 = vsel %vm400, 1, 0
        %v423 = vsel %vm401, 1, 0
        %424 = vset.pattern.permute.xlu0 0
        %425 = vperm.xlu0 %424, %v420
        %v426 = vpop.permute.xlu0 %425
        %427 = vset.pattern.permute.xlu0 0
        %428 = vperm.xlu0 %427, %v421
        %v429 = vpop.permute.xlu0 %428
        %430 = vset.pattern.permute.xlu0 0
        %431 = vperm.xlu0 %430, %v422
        %v432 = vpop.permute.xlu0 %431
        %433 = vset.pattern.permute.xlu0 0
        %434 = vperm.xlu0 %433, %v423
        %v435 = vpop.permute.xlu0 %434
        %vm436 = vcmp.eq.s32.totalorder %v426, 1
        %vm437 = vcmp.eq.s32.totalorder %v429, 1
        %vm438 = vcmp.eq.s32.totalorder %v432, 1
        %vm439 = vcmp.eq.s32.totalorder %v435, 1
        %vm440 = vmand %vm416, %vm436
        %vm441 = vmand %vm417, %vm437
        %vm442 = vmand %vm418, %vm438
        %vm443 = vmand %vm419, %vm439
        %v444 = vld [vmem:[#allocation2] sm:$0x1]
        %v445 = vsub.f32 0.0, %v372
        %v446 = vsub.f32 0.0, %v373
        %v447 = vsub.f32 0.0, %v374
        %v448 = vsub.f32 0.0, %v375
        %v449 = vsel %vm440, %v445, 0.0
        %v450 = vsel %vm441, %v446, 0.0
        %v451 = vsel %vm442, %v447, 0.0
        %v452 = vsel %vm443, %v448, 0.0
        %vm453 = vcmask 261120
        %v454 = vsel %vm453, %v449, 0.0
        %v455 = vsel %vm453, %v450, 0.0
        %v456 = vadd.f32 %v454, %v455
        %v457 = vsel %vm453, %v451, 0.0
        %v458 = vadd.f32 %v456, %v457
        %v459 = vsel %vm453, %v452, 0.0
        %v460 = vadd.f32 %v458, %v459
        %v461 = vrot.slane %v460, 4
        %v462 = vadd.f32 %v460, %v461
        %v463 = vrot.slane %v462, 2
        %v464 = vadd.f32 %v462, %v463
        %v465 = vrot.slane %v464, 1
        %v466 = vadd.f32 %v464, %v465
        %v467 = vadd.f32 %v444, %v466
        %vm468 = vcmask 253952
        %469 = vst.msk [vmem:[#allocation2] sm:$0x1] %vm468, %v467
        %v470 = vld [vmem:[#allocation3] sm:$0x1]
        %v471 = vsel %vm398, 1.0, 0.0
        %v472 = vsel %vm399, 1.0, 0.0
        %v473 = vsel %vm400, 1.0, 0.0
        %v474 = vsel %vm401, 1.0, 0.0
        %vm475 = vcmask 7168
        %v476 = vsel %vm475, %v471, 0.0
        %v477 = vsel %vm475, %v472, 0.0
        %v478 = vadd.f32 %v476, %v477
        %v479 = vsel %vm475, %v473, 0.0
        %v480 = vadd.f32 %v478, %v479
        %v481 = vsel %vm475, %v474, 0.0
        %v482 = vadd.f32 %v480, %v481
        %v483 = vrot.slane %v482, 4
        %v484 = vadd.f32 %v482, %v483
        %v485 = vrot.slane %v484, 2
        %v486 = vadd.f32 %v484, %v485
        %v487 = vrot.slane %v486, 1
        %v488 = vadd.f32 %v486, %v487
        %v489 = vadd.f32 %v470, %v488
        %vm490 = vcmask 0
        %491 = vst.msk [vmem:[#allocation3] sm:$0x1] %vm490, %v489
        %v492 = vld [vmem:[%s340] sm:$0xff]
        %v493 = vld [vmem:[%s340 + $0x8] sm:$0xff]
        %v494 = vld [vmem:[%s340 + $0x10] sm:$0xff]
        %v495 = vld [vmem:[%s340 + $0x18] sm:$0xff]
        %v496 = vld [vmem:[%s354] sm:$0xff]
        %v497 = vld [vmem:[%s354 + $0x8] sm:$0xff]
        %v498 = vld [vmem:[%s354 + $0x10] sm:$0xff]
        %v499 = vld [vmem:[%s354 + $0x18] sm:$0xff]
        %vm500 = vcmp.ne.s32.totalorder %v496, 4294967196
        %vm501 = vcmp.ne.s32.totalorder %v497, 4294967196
        %vm502 = vcmp.ne.s32.totalorder %v498, 4294967196
        %vm503 = vcmp.ne.s32.totalorder %v499, 4294967196
        %vm504 = vmand %vm500, %vm390
        %vm505 = vmand %vm501, %vm391
        %vm506 = vmand %vm502, %vm392
        %vm507 = vmand %vm503, %vm393
        %508 = vset.pattern.permute.xlu0 0
        %509 = vperm.xlu0 %508, %v496
        %v510 = vpop.permute.xlu0 %509
        %511 = vset.pattern.permute.xlu0 0
        %512 = vperm.xlu0 %511, %v497
        %v513 = vpop.permute.xlu0 %512
        %514 = vset.pattern.permute.xlu0 0
        %515 = vperm.xlu0 %514, %v498
        %v516 = vpop.permute.xlu0 %515
        %517 = vset.pattern.permute.xlu0 0
        %518 = vperm.xlu0 %517, %v499
        %v519 = vpop.permute.xlu0 %518
        %vm520 = vcmp.eq.s32.totalorder %v403, %v510
        %vm521 = vcmp.eq.s32.totalorder %v403, %v513
        %vm522 = vcmp.eq.s32.totalorder %v403, %v516
        %vm523 = vcmp.eq.s32.totalorder %v403, %v519
        %v524 = vsel %vm504, 1, 0
        %v525 = vsel %vm505, 1, 0
        %v526 = vsel %vm506, 1, 0
        %v527 = vsel %vm507, 1, 0
        %528 = vset.pattern.permute.xlu0 0
        %529 = vperm.xlu0 %528, %v524
        %v530 = vpop.permute.xlu0 %529
        %531 = vset.pattern.permute.xlu0 0
        %532 = vperm.xlu0 %531, %v525
        %v533 = vpop.permute.xlu0 %532
        %534 = vset.pattern.permute.xlu0 0
        %535 = vperm.xlu0 %534, %v526
        %v536 = vpop.permute.xlu0 %535
        %537 = vset.pattern.permute.xlu0 0
        %538 = vperm.xlu0 %537, %v527
        %v539 = vpop.permute.xlu0 %538
        %vm540 = vcmp.eq.s32.totalorder %v530, 1
        %vm541 = vcmp.eq.s32.totalorder %v533, 1
        %vm542 = vcmp.eq.s32.totalorder %v536, 1
        %vm543 = vcmp.eq.s32.totalorder %v539, 1
        %vm544 = vmand %vm520, %vm540
        %vm545 = vmand %vm521, %vm541
        %vm546 = vmand %vm522, %vm542
        %vm547 = vmand %vm523, %vm543
        %v548 = vld [vmem:[#allocation4] sm:$0x1]
        %v549 = vsub.f32 0.0, %v492
        %v550 = vsub.f32 0.0, %v493
        %v551 = vsub.f32 0.0, %v494
        %v552 = vsub.f32 0.0, %v495
        %v553 = vsel %vm544, %v549, 0.0
        %v554 = vsel %vm545, %v550, 0.0
        %v555 = vsel %vm546, %v551, 0.0
        %v556 = vsel %vm547, %v552, 0.0
        %vm557 = vcmask 130048
        %v558 = vsel %vm557, %v553, 0.0
        %v559 = vsel %vm557, %v554, 0.0
        %v560 = vadd.f32 %v558, %v559
        %v561 = vsel %vm557, %v555, 0.0
        %v562 = vadd.f32 %v560, %v561
        %v563 = vsel %vm557, %v556, 0.0
        %v564 = vadd.f32 %v562, %v563
        %v565 = vrot.slane %v564, 4
        %v566 = vadd.f32 %v564, %v565
        %v567 = vrot.slane %v566, 2
        %v568 = vadd.f32 %v566, %v567
        %v569 = vrot.slane %v568, 1
        %v570 = vadd.f32 %v568, %v569
        %v571 = vadd.f32 %v548, %v570
        %vm572 = vcmask 122880
        %573 = vst.msk [vmem:[#allocation4] sm:$0x1] %vm572, %v571
        %v574 = vld [vmem:[#allocation5] sm:$0x1]
        %v575 = vsel %vm504, 1.0, 0.0
        %v576 = vsel %vm505, 1.0, 0.0
        %v577 = vsel %vm506, 1.0, 0.0
        %v578 = vsel %vm507, 1.0, 0.0
        %v579 = vsel %vm475, %v575, 0.0
        %v580 = vsel %vm475, %v576, 0.0
        %v581 = vadd.f32 %v579, %v580
        %v582 = vsel %vm475, %v577, 0.0
        %v583 = vadd.f32 %v581, %v582
        %v584 = vsel %vm475, %v578, 0.0
        %v585 = vadd.f32 %v583, %v584
        %v586 = vrot.slane %v585, 4
        %v587 = vadd.f32 %v585, %v586
        %v588 = vrot.slane %v587, 2
        %v589 = vadd.f32 %v587, %v588
        %v590 = vrot.slane %v589, 1
        %v591 = vadd.f32 %v589, %v590
        %v592 = vadd.f32 %v574, %v591
        %593 = vst.msk [vmem:[#allocation5] sm:$0x1] %vm490, %v592
        %p594 = scmp.eq.s32.totalorder %s18, 3
        // Predicated region
        $region45: #{tpu_custom_call.1} parent=39 // pred_check
          %p595 = pneg %p594
        $region46: #{tpu_custom_call.1} parent=39 // pred_check_branch
          %597 = sbr.rel (%p595) target = $region48
        $region47: #{tpu_custom_call.1} parent=39 // pred_region
          %v598 = vld [vmem:[#allocation2] sm:$0x1]
          %v599 = vsel %vm468, %v598, 0.0
          %600 = vadd.xlane.f32.xlu0 %v599
          %v601 = vpop.xlane.xlu0 %600
          %v602 = vrot.slane %v601, 4
          %v603 = vadd.f32 %v601, %v602
          %v604 = vrot.slane %v603, 2
          %v605 = vadd.f32 %v603, %v604
          %v606 = vrot.slane %v605, 1
          %v607 = vadd.f32 %v605, %v606
          %s608 = vtos %v607
          %v609 = vld [vmem:[#allocation3] sm:$0x1]
          %s610 = vtos %v609
          %v611 = vstv %s610
          %v612 = vrcp.pop %v611
          %s613 = vtos %v612
          %s614 = smul.f32 %s608, %s613
          %v615 = vld [vmem:[#allocation4] sm:$0x1]
          %v616 = vsel %vm572, %v615, 0.0
          %617 = vadd.xlane.f32.xlu0 %v616
          %v618 = vpop.xlane.xlu0 %617
          %v619 = vrot.slane %v618, 4
          %v620 = vadd.f32 %v618, %v619
          %v621 = vrot.slane %v620, 2
          %v622 = vadd.f32 %v620, %v621
          %v623 = vrot.slane %v622, 1
          %v624 = vadd.f32 %v622, %v623
          %s625 = vtos %v624
          %v626 = vld [vmem:[#allocation5] sm:$0x1]
          %s627 = vtos %v626
          %v628 = vstv %s627
          %v629 = vrcp.pop %v628
          %s630 = vtos %v629
          %s631 = smul.f32 %s625, %s630
          %s632 = sld [smem:[#allocation6]]
          %s633 = smul.f32 %s614, %s632
          %s634 = smul.f32 %s631, %s632
          %s635 = sadd.f32 %s633, %s634
          %s636 = scalar_lea.smem [#allocation7], 0
          %637 = sst [smem:[%s636]] %s635
          %s638 = scalar_lea.smem [#allocation7], 1
          %639 = sst [smem:[%s638]] %s633
          %s640 = scalar_lea.smem [#allocation7], 2
          %641 = sst [smem:[%s640]] %s634
        $region48: #{tpu_custom_call.1} parent=39 // pred_fallthru
          _
        // Predicated region
        $region49: #{tpu_custom_call.1} parent=39 // pred_check
          %p642 = pneg %p156
        $region50: #{tpu_custom_call.1} parent=39 // pred_check_branch
          %644 = sbr.rel (%p642) target = $region52
        $region51: #{tpu_custom_call.1} parent=39 // pred_region
          %s646 = ssub.s32 16, 16
          %647 = vsyncadd [#allocation8], %s646
          %650 = dma.smem_to_hbm [#allocation7], 16, %s5, [#allocation8]
        $region52: #{tpu_custom_call.1} parent=39 // pred_fallthru
          _
        // Predicated region
        $region53: #{tpu_custom_call.1} parent=39 // pred_check
          %p651 = pneg %p156
        $region54: #{tpu_custom_call.1} parent=39 // pred_check_branch
          %653 = sbr.rel (%p651) target = $region56
        $region55: #{tpu_custom_call.1} parent=39 // pred_region
          %654 = dma.done [#allocation8], 16
        $region56: #{tpu_custom_call.1} parent=39 // pred_fallthru
          _
        %655 = sfence
      $region40: #{tpu_custom_call.1} parent=5 // pred_fallthru
        _
      %p656 = scmp.le.s32.totalorder 2, %s13
      // Predicated region
      $region57: #{tpu_custom_call.1} parent=5 // pred_check
        %p657 = pneg %p656
      $region58: #{tpu_custom_call.1} parent=5 // pred_check_branch
        %659 = sbr.rel (%p657) target = $region60
      $region59: #{tpu_custom_call.1} parent=5 // pred_region
        %s660 = ssub.s32 %s13, 2
      $region60: #{tpu_custom_call.1} parent=5 // pred_fallthru
        _
    $region6: #{tpu_custom_call.1} parent=1 // loop_footer
      %s17 = sadd.s32 1, %s13
    $region7: #{tpu_custom_call.1} parent=1 // loop_footer_branch
      %12 = sbr.rel target = $region3
    $region8: #{tpu_custom_call.1} parent=1 // loop_exit
      _
    %661 = vsyncpa [#allocation8], 1
    %s662 = scalar_lea.sflag [#allocation8], 1
    %663 = vsyncpa %s662, 1

</llo_original>
